<compile_context>
chip_gen: v5e
topology: v5e:2x2
jax: 0.10.0
libtpu: 0.0.40
codegen_flags: <defaults>
</compile_context>

<pallas_src>
import jax
import jax.numpy as jnp
from jax import lax
from jax.experimental import pallas as pl
from jax.experimental.pallas import tpu as pltpu


def _linear_kernel(x_ref, w_ref, b_ref, o_ref):
    # x_ref : (TM, K)  VMEM row tile
    # w_ref : (N,  K)  VMEM  (PyTorch layout, NOT transposed)
    # b_ref : (1,  N)  VMEM  (broadcast over rows)
    # o_ref : (TM, N)  VMEM
    acc = lax.dot_general(
        x_ref[...],
        w_ref[...],
        dimension_numbers=(((1,), (1,)), ((), ())),  # contract K of both
        preferred_element_type=jnp.float32,
    )
    o_ref[...] = (acc + b_ref[...]).astype(o_ref.dtype)


def _round_up(v, m):
    return (v + m - 1) // m * m


# Below this many rows the op is pure launch/step overhead: run one un-gridded
# block (whole x resident; ~2 MiB lane-padded at the threshold).
_SINGLE_BLOCK_MAX_ROWS = 4096
# Max rows per tile on the gridded path (multiple of 8; ~2 MiB lane-padded x
# per buffer -> ~8-9 MiB total double-buffered, fits v5e's 16 MiB scoped VMEM).
_TM_MAX = 4096


@jax.jit
def logreg_forward(x, weight, bias):
    """x: (M, ft_in) f32; weight: (nb_classes, ft_in); bias: (nb_classes,)."""
    M, K = x.shape
    N = weight.shape[0]

    if M <= _SINGLE_BLOCK_MAX_ROWS:
        # Single block: block dims equal full array dims -> exempt from the
        # (8,128) rule, no padding, no per-step pipeline overhead.
        TM = M
    else:
        # >= 2 tiles so the "parallel" row axis can split across both
        # TensorCores on v7x; tile rows capped at _TM_MAX and kept a multiple
        # of 8 so the BlockSpec is legal while the last tile may be ragged.
        TM = min(_TM_MAX, _round_up(pl.cdiv(M, 2), 8))

    grid = (pl.cdiv(M, TM),)
    b2 = bias.reshape(1, N)

    cost = pl.CostEstimate(
        flops=2 * M * K * N,
        bytes_accessed=(M * K + N * K + N + M * N) * 4,
        transcendentals=0,
    )

    out = pl.pallas_call(
        _linear_kernel,
        out_shape=jax.ShapeDtypeStruct((M, N), x.dtype),
        grid_spec=pltpu.PrefetchScalarGridSpec(
            num_scalar_prefetch=0,
            grid=grid,
            in_specs=[
                pl.BlockSpec((TM, K), lambda i: (i, 0)),   # x row tile
                pl.BlockSpec((N, K), lambda i: (0, 0)),    # full resident W
                pl.BlockSpec((1, N), lambda i: (0, 0)),    # bias
            ],
            out_specs=pl.BlockSpec((TM, N), lambda i: (i, 0)),
        ),
        compiler_params=pltpu.CompilerParams(
            dimension_semantics=("parallel",),
        ),
        cost_estimate=cost,
    )(x, weight, b2)

    return out


def xavier_uniform(key, shape, dtype=jnp.float32):
    # matches torch.nn.init.xavier_uniform_ for a Linear weight (out, in)
    fan_out, fan_in = shape
    limit = (6.0 / (fan_in + fan_out)) ** 0.5
    return jax.random.uniform(key, shape, dtype, minval=-limit, maxval=limit)


if __name__ == "__main__":
    ft_in = 32
    nb_classes = 7

    key = jax.random.PRNGKey(0)
    k_w, k_x1, k_x2, k_x3 = jax.random.split(key, 4)

    # Deterministic parameter init (LogReg.__init__: xavier_uniform weight, zero bias)
    weight = xavier_uniform(k_w, (nb_classes, ft_in))   # (nb_classes, ft_in)
    bias = jnp.zeros((nb_classes,), jnp.float32)

    # Small batch: single un-gridded block path (no padding anywhere).
    x_small = jax.random.normal(k_x1, (16, ft_in), jnp.float32)
    out_small = jax.block_until_ready(logreg_forward(x_small, weight, bias))
    ref_small = x_small @ weight.T + bias
    assert out_small.shape == (16, nb_classes)
    assert jnp.allclose(out_small, ref_small, atol=1e-5, rtol=1e-5)

    # Mid batch, not a multiple of 8: still a single block (dims == full array).
    x_mid = jax.random.normal(k_x3, (1000, ft_in), jnp.float32)
    out_mid = jax.block_until_ready(logreg_forward(x_mid, weight, bias))
    ref_mid = x_mid @ weight.T + bias
    assert out_mid.shape == (1000, nb_classes)
    assert jnp.allclose(out_mid, ref_mid, atol=1e-5, rtol=1e-5)

    # Large batch, not a multiple of the tile: gridded path with a ragged
    # last tile (no wrapper pad, no output slice).
    x_big = jax.random.normal(k_x2, (2 * 4096 + 40, ft_in), jnp.float32)
    out_big = jax.block_until_ready(logreg_forward(x_big, weight, bias))
    ref_big = x_big @ weight.T + bias
    assert out_big.shape == (2 * 4096 + 40, nb_classes)
    assert jnp.allclose(out_big, ref_big, atol=1e-5, rtol=1e-5)

    print("KERNEL_OK")
</pallas_src>

<mosaic_0001>
module attributes {stable_mosaic.version = 11 : i64} {
  func.func @_linear_kernel(%arg0: i32, %arg1: memref<16x32xf32, #tpu.memory_space<vmem>>, %arg2: memref<7x32xf32, #tpu.memory_space<vmem>>, %arg3: memref<1x7xf32, #tpu.memory_space<vmem>>, %arg4: memref<16x7xf32, #tpu.memory_space<vmem>>) attributes {dimension_semantics = [#tpu.dimension_semantics<parallel>], iteration_bounds = array<i64: 1>, scalar_prefetch = 0 : i64, scratch_operands = 0 : i64, tpu.core_type = #tpu.core_type<tc>, window_params = [{transform_indices = @transform_0, window_bounds = array<i64: 16, 32>}, {pipeline_mode = #tpu.pipeline_mode<synchronous>, transform_indices = @transform_1, window_bounds = array<i64: 7, 32>}, {pipeline_mode = #tpu.pipeline_mode<synchronous>, transform_indices = @transform_2, window_bounds = array<i64: 1, 7>}, {transform_indices = @transform_3, window_bounds = array<i64: 16, 7>}]} {
    %c0 = arith.constant 0 : index
    %c0_0 = arith.constant 0 : index
    %0 = vector.load %arg1[%c0, %c0_0] : memref<16x32xf32, #tpu.memory_space<vmem>>, vector<16x32xf32>
    %c0_1 = arith.constant 0 : index
    %c0_2 = arith.constant 0 : index
    %1 = vector.load %arg2[%c0_1, %c0_2] : memref<7x32xf32, #tpu.memory_space<vmem>>, vector<7x32xf32>
    %cst = arith.constant dense<0.000000e+00> : vector<16x7xf32>
    %2 = tpu.matmul %0, %1, %cst {dimension_numbers = #tpu.dot_dimension_numbers<[1], [1], [0], [0], [0, 0, 1, 0], [], []>} : vector<16x32xf32>, vector<7x32xf32>, vector<16x7xf32> -> vector<16x7xf32>
    %c0_3 = arith.constant 0 : index
    %c0_4 = arith.constant 0 : index
    %3 = vector.load %arg3[%c0_3, %c0_4] : memref<1x7xf32, #tpu.memory_space<vmem>>, vector<1x7xf32>
    %4 = vector.broadcast %3 : vector<1x7xf32> to vector<16x7xf32>
    %5 = arith.addf %2, %4 : vector<16x7xf32>
    %c0_5 = arith.constant 0 : index
    %c0_6 = arith.constant 0 : index
    %6 = vector.load %arg4[%c0_5, %c0_6] : memref<16x7xf32, #tpu.memory_space<vmem>>, vector<16x7xf32>
    tpu.vector_store %arg4[%c0_5, %c0_6], %5 {strides = array<i32>} : memref<16x7xf32, #tpu.memory_space<vmem>>, vector<16x7xf32>,
    return
  }
  func.func @transform_0(%arg0: i32) -> (i32, i32) {
    %c0_i32 = arith.constant 0 : i32
    %c0_i32_0 = arith.constant 0 : i32
    return %arg0, %c0_i32 : i32, i32
  }
  func.func @transform_1(%arg0: i32) -> (i32, i32) {
    %c0_i32 = arith.constant 0 : i32
    %c0_i32_0 = arith.constant 0 : i32
    %c0_i32_1 = arith.constant 0 : i32
    return %c0_i32, %c0_i32_0 : i32, i32
  }
  func.func @transform_2(%arg0: i32) -> (i32, i32) {
    %c0_i32 = arith.constant 0 : i32
    %c0_i32_0 = arith.constant 0 : i32
    %c0_i32_1 = arith.constant 0 : i32
    return %c0_i32, %c0_i32_0 : i32, i32
  }
  func.func @transform_3(%arg0: i32) -> (i32, i32) {
    %c0_i32 = arith.constant 0 : i32
    %c0_i32_0 = arith.constant 0 : i32
    return %arg0, %c0_i32 : i32, i32
  }
}

</mosaic_0001>

<llo_original>
// kernel: logreg_forward.1
$region0: #{logreg_forward.1}
  #allocation0 [shape = 'u32[]', space=smem, size = 0x4, offset = 0x4, fixed_abs, tag = 'smem constant byte address 0x4 - core index']
  #allocation1 [shape = 'u32[72,128]{1,0:T(1,128)}', space=vmem, size = 0x9000, scoped, tag = 'internal scratch']
  %s0 = inlined_call_operand.hbm [shape: f32[16,32], index: 0, kind: input, shape index: {}]
  %s1 = inlined_call_operand.hbm [shape: f32[7,32], index: 1, kind: input, shape index: {}]
  %s2 = inlined_call_operand.vmem [shape: f32[1,7], index: 2, kind: input, shape index: {}]
  %s3 = inlined_call_operand.vmem [shape: f32[16,7], index: 3, kind: output, shape index: {}]
  %s4 = sld [smem:[#allocation0]]
  $region30: #{logreg_forward.1} parent=0
    _
  %s6 = ssub.s32 1, %s4
  %s7 = scalar_select 0, %s6, %s4
  $region1: #{logreg_forward.1} parent=0
    #allocation2 [shape = 'u8[8192]{0}', space=vmem, size = 0x2000, scoped, tag = 'input window, operand 0, single buffered']
    #allocation3 [shape = 's32[1]{0}', space=sflag, size = 0x4, scoped, tag = 'scoped memory for logreg_forward.1']
    #allocation4 [shape = 'u8[4096]{0}', space=vmem, size = 0x1000, scoped, tag = 'input window, operand 1, single buffered']
    #allocation5 [shape = 's32[1]{0}', space=sflag, size = 0x4, scoped, tag = 'scoped memory for logreg_forward.1']
    %8 = vsyncpa [#allocation3], 0
    %9 = vsyncpa [#allocation5], 0
    // Predicated region
    $region2: #{logreg_forward.1} parent=1 // pred_check
      _
    $region3: #{logreg_forward.1} parent=1 // pred_check_branch
      %11 = sbr.rel (0) target = $region5
    $region4: #{logreg_forward.1} parent=1 // pred_region
      %13 = vsyncadd [#allocation3], 0
      %s14 = sshll.u32 %s0, 4
      %s15 = int_to_ptr.hbm [resolvable:$true] %s14
      %s16 = sshll.u32 [#allocation2], 4
      %s17 = int_to_ptr.vmem [resolvable:$true] %s16
      %22 = dma.hbm_to_vmem [thread:$0]  %s15, 256, %s17, [#allocation3], 128, 128, 8
    $region5: #{logreg_forward.1} parent=1 // pred_fallthru
      _
    // Predicated region
    $region6: #{logreg_forward.1} parent=1 // pred_check
      _
    $region7: #{logreg_forward.1} parent=1 // pred_check_branch
      %24 = sbr.rel (0) target = $region9
    $region8: #{logreg_forward.1} parent=1 // pred_region
      %26 = vsyncadd [#allocation5], 0
      %s28 = sshll.u32 %s1, 4
      %s29 = int_to_ptr.hbm [resolvable:$true] %s28
      %s30 = sshll.u32 [#allocation4], 4
      %s31 = int_to_ptr.vmem [resolvable:$true] %s30
      %33 = dma.hbm_to_vmem [thread:$0]  %s29, 128, %s31, [#allocation5]
    $region9: #{logreg_forward.1} parent=1 // pred_fallthru
      _
    // Predicated region
    $region10: #{logreg_forward.1} parent=1 // pred_check
      _
    $region11: #{logreg_forward.1} parent=1 // pred_check_branch
      %35 = sbr.rel (0) target = $region13
    $region12: #{logreg_forward.1} parent=1 // pred_region
      _
    $region13: #{logreg_forward.1} parent=1 // pred_fallthru
      _
    // Predicated region
    $region14: #{logreg_forward.1} parent=1 // pred_check
      _
    $region15: #{logreg_forward.1} parent=1 // pred_check_branch
      %37 = sbr.rel (0) target = $region17
    $region16: #{logreg_forward.1} parent=1 // pred_region
      %39 = dma.done [#allocation3], 256
    $region17: #{logreg_forward.1} parent=1 // pred_fallthru
      _
    // Predicated region
    $region18: #{logreg_forward.1} parent=1 // pred_check
      _
    $region19: #{logreg_forward.1} parent=1 // pred_check_branch
      %41 = sbr.rel (0) target = $region21
    $region20: #{logreg_forward.1} parent=1 // pred_region
      %43 = dma.done [#allocation5], 128
    $region21: #{logreg_forward.1} parent=1 // pred_fallthru
      _
    %v44 = vld [vmem:[#allocation2] sm:$0xff]
    %v45 = vld [vmem:[#allocation2 + $0x8] sm:$0xff]
    %v46 = vld [vmem:[#allocation4] sm:$0x7f]
    %v47 = vld [vmem:[%s2] sm:$0x1]
    %v49 = vperm.slane %v47, 0
    %vm51 = vcmask 261120
    %v53 = vsel %vm51, %v44, 0
    %v56 = vsel %vm51, %v45, 0
    %v59 = vsel %vm51, %v46, 0
    %61 = vmatpush.xpose.msra.mxu0 0.0
    %62 = vmatpush.xpose.msra.mxu0 0.0
    %63 = vmatpush.xpose.msra.mxu0 0.0
    %64 = vmatpush.xpose.msra.mxu0 0.0
    %65 = vmatpush.xpose.msra.mxu0 0.0
    %66 = vmatpush.xpose.msra.mxu0 0.0
    %67 = vmatpush.xpose.msra.mxu0 0.0
    %68 = vmatpush.xpose.msra.mxu0 0.0
    %69 = vmatpush.xpose.msra.mxu0 0.0
    %70 = vmatpush.xpose.msra.mxu0 0.0
    %71 = vmatpush.xpose.msra.mxu0 0.0
    %72 = vmatpush.xpose.msra.mxu0 0.0
    %73 = vmatpush.xpose.msra.mxu0 0.0
    %74 = vmatpush.xpose.msra.mxu0 0.0
    %75 = vmatpush.xpose.msra.mxu0 0.0
    %76 = vmatpush.xpose.msra.mxu0 %v59
    %77 = vmatmul.f32.gmra.mxu0 %v53
    %v78 = vpop.f32.mrf.mxu0
    %v79 = vadd.f32 %v49, %v78
    %80 = vmatmul.f32.gmra.mxu0 %v56
    %v81 = vpop.f32.mrf.mxu0
    %v82 = vadd.f32 %v49, %v81
    %83 = vdwg.mxu0
    %vm84 = vcmask 56320
    %85 = vst.msk [vmem:[%s3] sm:$0xff] %vm84, %v79
    %86 = vst.msk [vmem:[%s3 + $0x8] sm:$0xff] %vm84, %v82
    // Predicated region
    $region22: #{logreg_forward.1} parent=1 // pred_check
      _
    $region23: #{logreg_forward.1} parent=1 // pred_check_branch
      %88 = sbr.rel (0) target = $region25
    $region24: #{logreg_forward.1} parent=1 // pred_region
      _
    $region25: #{logreg_forward.1} parent=1 // pred_fallthru
      _
    // Predicated region
    $region26: #{logreg_forward.1} parent=1 // pred_check
      _
    $region27: #{logreg_forward.1} parent=1 // pred_check_branch
      %90 = sbr.rel (0) target = $region29
    $region28: #{logreg_forward.1} parent=1 // pred_region
      _
    $region29: #{logreg_forward.1} parent=1 // pred_fallthru
      _
    %91 = vsyncpa [#allocation3], 1
    %92 = vsyncpa [#allocation5], 1

</llo_original>
